<compile_context>
chip_gen: v6e
topology: v6e:2x2x1
jax: 0.10.0
libtpu: 0.0.40
codegen_flags: <defaults>
</compile_context>

<pallas_src>
import jax
import jax.numpy as jnp
import numpy as np
from jax.experimental import pallas as pl
from jax.experimental.pallas import tpu as pltpu

# ---- static problem sizes (ConvNet.__init__ with a 16x16 example) -----------
H, W = 16, 16                        # self.h, self.w
CIN, COUT = 2, 2                     # nn.Conv2d(2, 2, kernel_size=5, stride=1)
KH, KW = 5, 5
OH, OW = H - KH + 1, W - KW + 1      # conv2d_size_out -> 12, 12
FIN = CIN * H * W                    # 512 = flattened NCHW input (conv matmul K)
FEAT = COUT * OH * OW                # 288 = linear_input_size
FEAT_PAD = 384                       # 288 padded up to 3*128 (lane aligned)
NREG = 4                             # number_of_regressors
B = 2                                # test batch


def _round_up(n, m):
    return ((n + m - 1) // m) * m


# ---------------------------- fused Pallas kernel -----------------------------
def convnet_kernel(x_ref, tconv_ref, bconv_ref, wlin_ref, blin_ref, o_ref):
    """relu(relu(x_flat @ T + b_conv) @ W_lin + b_lin) for one batch block.

    x_ref     : (BM, FIN)        f32   flattened NCHW input block
    tconv_ref : (FIN, FEAT_PAD)  bf16  conv expanded to a dense matrix (padded)
    bconv_ref : (1, FEAT_PAD)    f32   conv bias row (padded with zeros)
    wlin_ref  : (FEAT_PAD, NREG) bf16  linear weight, pre-transposed (padded)
    blin_ref  : (1, NREG)        f32
    o_ref     : (BM, NREG)       f32
    """
    xb = x_ref[...].astype(jnp.bfloat16)                    # bf16 MXU path
    h = jnp.dot(xb, tconv_ref[...], preferred_element_type=jnp.float32)
    h = jnp.maximum(h + bconv_ref[...], 0.0)                # conv + ReLU (BM, 384)
    y = jnp.dot(h.astype(jnp.bfloat16), wlin_ref[...],
                preferred_element_type=jnp.float32)
    o_ref[...] = jnp.maximum(y + blin_ref[...], 0.0)        # linear + ReLU (BM, 4)


# ------------------------ one-time parameter preparation ----------------------
def prepare_params(w_conv, b_conv, w_lin, b_lin):
    """Pre-compute matmul-ready operands (done once, not per forward call).

    T[ci*H*W + y*W + x, co*OH*OW + oy*OW + ox] = w_conv[co, ci, y-oy, x-ox]
    (zero outside the 5x5 window), so x.view(B, -1) @ T reproduces the valid
    stride-1 conv in torch's NCHW-flatten order -- the linear weight therefore
    needs no permutation.  Columns 288..383 are zero padding.
    """
    sy = np.zeros((KH, H, OH), np.float32)
    for ky in range(KH):
        for oy in range(OH):
            sy[ky, oy + ky, oy] = 1.0
    sx = np.zeros((KW, W, OW), np.float32)
    for kx in range(KW):
        for ox in range(OW):
            sx[kx, ox + kx, ox] = 1.0
    t = jnp.einsum("oikl,kyp,lxq->iyxopq",
                   w_conv.astype(jnp.float32),
                   jnp.asarray(sy), jnp.asarray(sx))
    t_conv = t.reshape(FIN, FEAT)                                       # (512, 288)
    t_conv = jnp.pad(t_conv, ((0, 0), (0, FEAT_PAD - FEAT)))            # (512, 384)
    t_conv = t_conv.astype(jnp.bfloat16)

    b_conv_row = jnp.repeat(b_conv.astype(jnp.float32), OH * OW)[None, :]
    b_conv_row = jnp.pad(b_conv_row, ((0, 0), (0, FEAT_PAD - FEAT)))    # (1, 384)

    w_lin_t = w_lin.astype(jnp.float32).T                               # (288, 4)
    w_lin_t = jnp.pad(w_lin_t, ((0, FEAT_PAD - FEAT), (0, 0)))          # (384, 4)
    w_lin_t = w_lin_t.astype(jnp.bfloat16)

    b_lin_row = b_lin.astype(jnp.float32)[None, :]                      # (1, 4)
    return t_conv, b_conv_row, w_lin_t, b_lin_row


# ---------------------------------- wrapper ------------------------------------
def convnet_forward(x, t_conv, b_conv_row, w_lin_t, b_lin_row, *, block_rows=512):
    """x: (B, CIN, H, W) or anything reshapeable to (B, CIN*H*W) (torch .view)."""
    b_in = x.shape[0]
    xf = x.reshape(b_in, FIN).astype(jnp.float32)       # == x.view(B, -1) (NCHW)

    bm = min(block_rows, _round_up(b_in, 8))
    bm = _round_up(bm, 8)                               # f32 sublane tile
    b_pad = _round_up(b_in, bm)
    if b_pad != b_in:
        xf = jnp.pad(xf, ((0, b_pad - b_in), (0, 0)))
    grid = (b_pad // bm,)

    flops = 2 * b_pad * FIN * FEAT_PAD + 2 * b_pad * FEAT_PAD * NREG
    bytes_accessed = (xf.size * 4 + t_conv.size * 2 + w_lin_t.size * 2
                      + b_conv_row.size * 4 + b_lin_row.size * 4
                      + b_pad * NREG * 4)

    out = pl.pallas_call(
        convnet_kernel,
        out_shape=jax.ShapeDtypeStruct((b_pad, NREG), jnp.float32),
        grid_spec=pltpu.PrefetchScalarGridSpec(
            num_scalar_prefetch=0,
            grid=grid,
            in_specs=[
                # batch-blocked input
                pl.BlockSpec((bm, FIN), lambda i: (i, 0)),
                # weights & biases: constant block index -> resident across grid
                pl.BlockSpec((FIN, FEAT_PAD), lambda i: (0, 0)),
                pl.BlockSpec((1, FEAT_PAD), lambda i: (0, 0)),
                pl.BlockSpec((FEAT_PAD, NREG), lambda i: (0, 0)),
                pl.BlockSpec((1, NREG), lambda i: (0, 0)),
            ],
            out_specs=pl.BlockSpec((bm, NREG), lambda i: (i, 0)),
        ),
        compiler_params=pltpu.CompilerParams(
            dimension_semantics=("parallel",)),   # v7x: both TCs share the batch grid
        cost_estimate=pl.CostEstimate(
            flops=flops, transcendentals=0, bytes_accessed=bytes_accessed),
    )(xf, t_conv, b_conv_row, w_lin_t, b_lin_row)
    return out[:b_in]


# ----------------------------- references ---------------------------------------
def convnet_reference_f32(x, w_conv, b_conv, w_lin, b_lin):
    """Exact f32 module semantics (conv + relu + linear + relu)."""
    x = x.reshape(x.shape[0], CIN, H, W).astype(jnp.float32)
    conv = jax.lax.conv_general_dilated(
        x, w_conv, window_strides=(1, 1), padding="VALID",
        dimension_numbers=("NCHW", "OIHW", "NCHW"))
    conv = jnp.maximum(conv + b_conv.reshape(1, COUT, 1, 1), 0.0)
    flat = conv.reshape(x.shape[0], FEAT)
    return jnp.maximum(flat @ w_lin.T + b_lin, 0.0)


def convnet_reference_bf16(x, t_conv, b_conv_row, w_lin_t, b_lin_row):
    """Numerically-matched reference using the same bf16 operands as the kernel."""
    xf = x.reshape(x.shape[0], FIN).astype(jnp.bfloat16)
    h = jnp.dot(xf, t_conv, preferred_element_type=jnp.float32)
    h = jnp.maximum(h + b_conv_row, 0.0)
    y = jnp.dot(h.astype(jnp.bfloat16), w_lin_t, preferred_element_type=jnp.float32)
    return jnp.maximum(y + b_lin_row, 0.0)


# ------------------------------------ main --------------------------------------
if __name__ == "__main__":
    key = jax.random.PRNGKey(0)
    k_x, k_wc, k_bc, k_wl, k_bl = jax.random.split(key, 5)

    # deterministic synthetic parameters (PyTorch-style fan-in scaling)
    x = jax.random.normal(k_x, (B, CIN, H, W), dtype=jnp.float32)
    w_conv = jax.random.uniform(k_wc, (COUT, CIN, KH, KW), jnp.float32,
                                -1.0, 1.0) / np.sqrt(CIN * KH * KW)
    b_conv = jax.random.uniform(k_bc, (COUT,), jnp.float32,
                                -1.0, 1.0) / np.sqrt(CIN * KH * KW)
    w_lin = jax.random.uniform(k_wl, (NREG, FEAT), jnp.float32,
                               -1.0, 1.0) / np.sqrt(FEAT)
    b_lin = jax.random.uniform(k_bl, (NREG,), jnp.float32,
                               -1.0, 1.0) / np.sqrt(FEAT)

    # one-time parameter prep (Toeplitz expansion, padding, bf16 cast)
    t_conv, b_conv_row, w_lin_t, b_lin_row = jax.block_until_ready(
        prepare_params(w_conv, b_conv, w_lin, b_lin))

    out = jax.block_until_ready(
        convnet_forward(x, t_conv, b_conv_row, w_lin_t, b_lin_row))
    assert out.shape == (B, NREG), out.shape

    # tight check against the bf16-matched reference (same rounded operands)
    ref_bf16 = jax.block_until_ready(
        convnet_reference_bf16(x, t_conv, b_conv_row, w_lin_t, b_lin_row))
    np.testing.assert_allclose(np.asarray(out), np.asarray(ref_bf16),
                               rtol=1e-3, atol=1e-3)

    # loose check against the exact f32 module semantics (bf16 weight rounding)
    ref_f32 = jax.block_until_ready(
        convnet_reference_f32(x, w_conv, b_conv, w_lin, b_lin))
    np.testing.assert_allclose(np.asarray(out), np.asarray(ref_f32),
                               rtol=5e-2, atol=5e-2)

    print("KERNEL_OK")
</pallas_src>

<mosaic_0001>
module attributes {stable_mosaic.version = 11 : i64} {
  func.func @convnet_kernel(%arg0: i32, %arg1: memref<8x512xf32, #tpu.memory_space<vmem>>, %arg2: memref<512x384xbf16, #tpu.memory_space<vmem>>, %arg3: memref<1x384xf32, #tpu.memory_space<vmem>>, %arg4: memref<384x4xbf16, #tpu.memory_space<vmem>>, %arg5: memref<1x4xf32, #tpu.memory_space<vmem>>, %arg6: memref<8x4xf32, #tpu.memory_space<vmem>>) attributes {dimension_semantics = [#tpu.dimension_semantics<parallel>], iteration_bounds = array<i64: 1>, scalar_prefetch = 0 : i64, scratch_operands = 0 : i64, tpu.core_type = #tpu.core_type<tc>, window_params = [{transform_indices = @transform_0, window_bounds = array<i64: 8, 512>}, {pipeline_mode = #tpu.pipeline_mode<synchronous>, transform_indices = @transform_1, window_bounds = array<i64: 512, 384>}, {pipeline_mode = #tpu.pipeline_mode<synchronous>, transform_indices = @transform_2, window_bounds = array<i64: 1, 384>}, {pipeline_mode = #tpu.pipeline_mode<synchronous>, transform_indices = @transform_3, window_bounds = array<i64: 384, 4>}, {pipeline_mode = #tpu.pipeline_mode<synchronous>, transform_indices = @transform_4, window_bounds = array<i64: 1, 4>}, {transform_indices = @transform_5, window_bounds = array<i64: 8, 4>}]} {
    %c0 = arith.constant 0 : index
    %c0_0 = arith.constant 0 : index
    %0 = vector.load %arg1[%c0, %c0_0] : memref<8x512xf32, #tpu.memory_space<vmem>>, vector<8x512xf32>
    %1 = arith.truncf %0 : vector<8x512xf32> to vector<8x512xbf16>
    %c0_1 = arith.constant 0 : index
    %c0_2 = arith.constant 0 : index
    %2 = vector.load %arg2[%c0_1, %c0_2] : memref<512x384xbf16, #tpu.memory_space<vmem>>, vector<512x384xbf16>
    %cst = arith.constant dense<0.000000e+00> : vector<8x384xf32>
    %3 = tpu.matmul %1, %2, %cst {dimension_numbers = #tpu.dot_dimension_numbers<[1], [0], [0], [1], [0, 0, 1, 1], [], []>} : vector<8x512xbf16>, vector<512x384xbf16>, vector<8x384xf32> -> vector<8x384xf32>
    %c0_3 = arith.constant 0 : index
    %c0_4 = arith.constant 0 : index
    %4 = vector.load %arg3[%c0_3, %c0_4] : memref<1x384xf32, #tpu.memory_space<vmem>>, vector<1x384xf32>
    %5 = vector.broadcast %4 : vector<1x384xf32> to vector<8x384xf32>
    %6 = arith.addf %3, %5 : vector<8x384xf32>
    %cst_5 = arith.constant 0.000000e+00 : f32
    %7 = vector.broadcast %cst_5 : f32 to vector<8x384xf32>
    %8 = arith.maximumf %6, %7 : vector<8x384xf32>
    %9 = arith.truncf %8 : vector<8x384xf32> to vector<8x384xbf16>
    %c0_6 = arith.constant 0 : index
    %c0_7 = arith.constant 0 : index
    %10 = vector.load %arg4[%c0_6, %c0_7] : memref<384x4xbf16, #tpu.memory_space<vmem>>, vector<384x4xbf16>
    %cst_8 = arith.constant dense<0.000000e+00> : vector<8x4xf32>
    %11 = tpu.matmul %9, %10, %cst_8 {dimension_numbers = #tpu.dot_dimension_numbers<[1], [0], [0], [1], [0, 0, 1, 1], [], []>} : vector<8x384xbf16>, vector<384x4xbf16>, vector<8x4xf32> -> vector<8x4xf32>
    %c0_9 = arith.constant 0 : index
    %c0_10 = arith.constant 0 : index
    %12 = vector.load %arg5[%c0_9, %c0_10] : memref<1x4xf32, #tpu.memory_space<vmem>>, vector<1x4xf32>
    %13 = vector.broadcast %12 : vector<1x4xf32> to vector<8x4xf32>
    %14 = arith.addf %11, %13 : vector<8x4xf32>
    %cst_11 = arith.constant 0.000000e+00 : f32
    %15 = vector.broadcast %cst_11 : f32 to vector<8x4xf32>
    %16 = arith.maximumf %14, %15 : vector<8x4xf32>
    %c0_12 = arith.constant 0 : index
    %c0_13 = arith.constant 0 : index
    %17 = vector.load %arg6[%c0_12, %c0_13] : memref<8x4xf32, #tpu.memory_space<vmem>>, vector<8x4xf32>
    tpu.vector_store %arg6[%c0_12, %c0_13], %16 {strides = array<i32>} : memref<8x4xf32, #tpu.memory_space<vmem>>, vector<8x4xf32>,
    return
  }
  func.func @transform_0(%arg0: i32) -> (i32, i32) {
    %c0_i32 = arith.constant 0 : i32
    %c0_i32_0 = arith.constant 0 : i32
    return %arg0, %c0_i32 : i32, i32
  }
  func.func @transform_1(%arg0: i32) -> (i32, i32) {
    %c0_i32 = arith.constant 0 : i32
    %c0_i32_0 = arith.constant 0 : i32
    %c0_i32_1 = arith.constant 0 : i32
    return %c0_i32, %c0_i32_0 : i32, i32
  }
  func.func @transform_2(%arg0: i32) -> (i32, i32) {
    %c0_i32 = arith.constant 0 : i32
    %c0_i32_0 = arith.constant 0 : i32
    %c0_i32_1 = arith.constant 0 : i32
    return %c0_i32, %c0_i32_0 : i32, i32
  }
  func.func @transform_3(%arg0: i32) -> (i32, i32) {
    %c0_i32 = arith.constant 0 : i32
    %c0_i32_0 = arith.constant 0 : i32
    %c0_i32_1 = arith.constant 0 : i32
    return %c0_i32, %c0_i32_0 : i32, i32
  }
  func.func @transform_4(%arg0: i32) -> (i32, i32) {
    %c0_i32 = arith.constant 0 : i32
    %c0_i32_0 = arith.constant 0 : i32
    %c0_i32_1 = arith.constant 0 : i32
    return %c0_i32, %c0_i32_0 : i32, i32
  }
  func.func @transform_5(%arg0: i32) -> (i32, i32) {
    %c0_i32 = arith.constant 0 : i32
    %c0_i32_0 = arith.constant 0 : i32
    return %arg0, %c0_i32 : i32, i32
  }
}

</mosaic_0001>

<llo_original>
// kernel: tpu_custom_call.1
$region0: #{tpu_custom_call.1}
  #allocation0 [shape = 'u32[]', space=smem, size = 0x4, offset = 0x4, fixed_abs, tag = 'smem constant byte address 0x4 - core index']
  #allocation1 [shape = 'u32[144,128]{1,0:T(1,128)}', space=vmem, size = 0x12000, scoped, tag = 'internal scratch']
  %s0 = inlined_call_operand.vmem [shape: f32[8,512], index: 0, kind: input, shape index: {}]
  %s1 = inlined_call_operand.hbm [shape: bf16[512,384], index: 1, kind: input, shape index: {}]
  %s2 = inlined_call_operand.vmem [shape: f32[1,384], index: 2, kind: input, shape index: {}]
  %s3 = inlined_call_operand.vmem [shape: bf16[384,4], index: 3, kind: input, shape index: {}]
  %s4 = inlined_call_operand.vmem [shape: f32[1,4], index: 4, kind: input, shape index: {}]
  %s5 = inlined_call_operand.vmem [shape: f32[8,4], index: 5, kind: output, shape index: {}]
  %s6 = sld [smem:[#allocation0]]
  $region34: #{tpu_custom_call.1} parent=0
    _
  %s8 = ssub.s32 1, %s6
  %s9 = scalar_select 0, %s8, %s6
  $region1: #{tpu_custom_call.1} parent=0
    #allocation2 [shape = 'u8[393216]{0}', space=vmem, size = 0x60000, scoped, tag = 'input window, operand 1, single buffered']
    #allocation3 [shape = 's32[1]{0}', space=sflag, size = 0x4, scoped, tag = 'scoped memory for tpu_custom_call.1']
    %10 = vsyncpa [#allocation3], 0
    // Predicated region
    $region2: #{tpu_custom_call.1} parent=1 // pred_check
      _
    $region3: #{tpu_custom_call.1} parent=1 // pred_check_branch
      %12 = sbr.rel (0) target = $region5
    $region4: #{tpu_custom_call.1} parent=1 // pred_region
      _
    $region5: #{tpu_custom_call.1} parent=1 // pred_fallthru
      _
    // Predicated region
    $region6: #{tpu_custom_call.1} parent=1 // pred_check
      _
    $region7: #{tpu_custom_call.1} parent=1 // pred_check_branch
      %14 = sbr.rel (0) target = $region9
    $region8: #{tpu_custom_call.1} parent=1 // pred_region
      %s16 = ssub.s32 12288, 12288
      %17 = vsyncadd [#allocation3], %s16
      %s18 = sshll.u32 [#allocation2], 4
      %s19 = int_to_ptr.vmem [resolvable:$true] %s18
      %24 = dma.hbm_to_vmem [thread:$0]  %s1, 12288, %s19, [#allocation3], 192, 192, 12
    $region9: #{tpu_custom_call.1} parent=1 // pred_fallthru
      _
    // Predicated region
    $region10: #{tpu_custom_call.1} parent=1 // pred_check
      _
    $region11: #{tpu_custom_call.1} parent=1 // pred_check_branch
      %26 = sbr.rel (0) target = $region13
    $region12: #{tpu_custom_call.1} parent=1 // pred_region
      _
    $region13: #{tpu_custom_call.1} parent=1 // pred_fallthru
      _
    // Predicated region
    $region14: #{tpu_custom_call.1} parent=1 // pred_check
      _
    $region15: #{tpu_custom_call.1} parent=1 // pred_check_branch
      %28 = sbr.rel (0) target = $region17
    $region16: #{tpu_custom_call.1} parent=1 // pred_region
      _
    $region17: #{tpu_custom_call.1} parent=1 // pred_fallthru
      _
    // Predicated region
    $region18: #{tpu_custom_call.1} parent=1 // pred_check
      _
    $region19: #{tpu_custom_call.1} parent=1 // pred_check_branch
      %30 = sbr.rel (0) target = $region21
    $region20: #{tpu_custom_call.1} parent=1 // pred_region
      _
    $region21: #{tpu_custom_call.1} parent=1 // pred_fallthru
      _
    // Predicated region
    $region22: #{tpu_custom_call.1} parent=1 // pred_check
      _
    $region23: #{tpu_custom_call.1} parent=1 // pred_check_branch
      %32 = sbr.rel (0) target = $region25
    $region24: #{tpu_custom_call.1} parent=1 // pred_region
      %33 = dma.done [#allocation3], 12288
    $region25: #{tpu_custom_call.1} parent=1 // pred_fallthru
      _
    %v35 = vld [vmem:[%s0] sm:$0xff]
    %v36 = vld [vmem:[%s0 + $0x8] sm:$0xff]
    %v37 = vld [vmem:[%s0 + $0x10] sm:$0xff]
    %v38 = vld [vmem:[%s0 + $0x18] sm:$0xff]
    %v39 = vpack.c.bf16 %v35, %v35
    %v40 = vpack.c.bf16 %v36, %v36
    %v41 = vpack.c.bf16 %v37, %v37
    %v42 = vpack.c.bf16 %v38, %v38
    %v43 = vld [vmem:[#allocation2] sm:$0xff]
    %v44 = vld [vmem:[#allocation2 + $0x8] sm:$0xf]
    %v45 = vld [vmem:[#allocation2 + $0xc] sm:$0xff]
    %v46 = vld [vmem:[#allocation2 + $0x14] sm:$0xf]
    %v47 = vld [vmem:[#allocation2 + $0x18] sm:$0xff]
    %v48 = vld [vmem:[#allocation2 + $0x20] sm:$0xf]
    %v49 = vld [vmem:[#allocation2 + $0x24] sm:$0xff]
    %v50 = vld [vmem:[#allocation2 + $0x2c] sm:$0xf]
    %v51 = vld [vmem:[#allocation2 + $0x30] sm:$0xff]
    %v52 = vld [vmem:[#allocation2 + $0x38] sm:$0xf]
    %v53 = vld [vmem:[#allocation2 + $0x3c] sm:$0xff]
    %v54 = vld [vmem:[#allocation2 + $0x44] sm:$0xf]
    %v55 = vld [vmem:[#allocation2 + $0x48] sm:$0xff]
    %v56 = vld [vmem:[#allocation2 + $0x50] sm:$0xf]
    %v57 = vld [vmem:[#allocation2 + $0x54] sm:$0xff]
    %v58 = vld [vmem:[#allocation2 + $0x5c] sm:$0xf]
    %v59 = vld [vmem:[#allocation2 + $0x60] sm:$0xff]
    %v60 = vld [vmem:[#allocation2 + $0x68] sm:$0xf]
    %v61 = vld [vmem:[#allocation2 + $0x6c] sm:$0xff]
    %v62 = vld [vmem:[#allocation2 + $0x74] sm:$0xf]
    %v63 = vld [vmem:[#allocation2 + $0x78] sm:$0xff]
    %v64 = vld [vmem:[#allocation2 + $0x80] sm:$0xf]
    %v65 = vld [vmem:[#allocation2 + $0x84] sm:$0xff]
    %v66 = vld [vmem:[#allocation2 + $0x8c] sm:$0xf]
    %v67 = vld [vmem:[#allocation2 + $0x90] sm:$0xff]
    %v68 = vld [vmem:[#allocation2 + $0x98] sm:$0xf]
    %v69 = vld [vmem:[#allocation2 + $0x9c] sm:$0xff]
    %v70 = vld [vmem:[#allocation2 + $0xa4] sm:$0xf]
    %v71 = vld [vmem:[#allocation2 + $0xa8] sm:$0xff]
    %v72 = vld [vmem:[#allocation2 + $0xb0] sm:$0xf]
    %v73 = vld [vmem:[#allocation2 + $0xb4] sm:$0xff]
    %v74 = vld [vmem:[#allocation2 + $0xbc] sm:$0xf]
    %v75 = vld [vmem:[#allocation2 + $0xc0] sm:$0xff]
    %v76 = vld [vmem:[#allocation2 + $0xc8] sm:$0xf]
    %v77 = vld [vmem:[#allocation2 + $0xcc] sm:$0xff]
    %v78 = vld [vmem:[#allocation2 + $0xd4] sm:$0xf]
    %v79 = vld [vmem:[#allocation2 + $0xd8] sm:$0xff]
    %v80 = vld [vmem:[#allocation2 + $0xe0] sm:$0xf]
    %v81 = vld [vmem:[#allocation2 + $0xe4] sm:$0xff]
    %v82 = vld [vmem:[#allocation2 + $0xec] sm:$0xf]
    %v83 = vld [vmem:[#allocation2 + $0xf0] sm:$0xff]
    %v84 = vld [vmem:[#allocation2 + $0xf8] sm:$0xf]
    %v85 = vld [vmem:[#allocation2 + $0xfc] sm:$0xff]
    %v86 = vld [vmem:[#allocation2 + $0x104] sm:$0xf]
    %v87 = vld [vmem:[#allocation2 + $0x108] sm:$0xff]
    %v88 = vld [vmem:[#allocation2 + $0x110] sm:$0xf]
    %v89 = vld [vmem:[#allocation2 + $0x114] sm:$0xff]
    %v90 = vld [vmem:[#allocation2 + $0x11c] sm:$0xf]
    %v91 = vld [vmem:[#allocation2 + $0x120] sm:$0xff]
    %v92 = vld [vmem:[#allocation2 + $0x128] sm:$0xf]
    %v93 = vld [vmem:[#allocation2 + $0x12c] sm:$0xff]
    %v94 = vld [vmem:[#allocation2 + $0x134] sm:$0xf]
    %v95 = vld [vmem:[#allocation2 + $0x138] sm:$0xff]
    %v96 = vld [vmem:[#allocation2 + $0x140] sm:$0xf]
    %v97 = vld [vmem:[#allocation2 + $0x144] sm:$0xff]
    %v98 = vld [vmem:[#allocation2 + $0x14c] sm:$0xf]
    %v99 = vld [vmem:[#allocation2 + $0x150] sm:$0xff]
    %v100 = vld [vmem:[#allocation2 + $0x158] sm:$0xf]
    %v101 = vld [vmem:[#allocation2 + $0x15c] sm:$0xff]
    %v102 = vld [vmem:[#allocation2 + $0x164] sm:$0xf]
    %v103 = vld [vmem:[#allocation2 + $0x168] sm:$0xff]
    %v104 = vld [vmem:[#allocation2 + $0x170] sm:$0xf]
    %v105 = vld [vmem:[#allocation2 + $0x174] sm:$0xff]
    %v106 = vld [vmem:[#allocation2 + $0x17c] sm:$0xf]
    %v107 = vld [vmem:[#allocation2 + $0x180] sm:$0xff]
    %v108 = vld [vmem:[#allocation2 + $0x188] sm:$0xf]
    %v109 = vld [vmem:[#allocation2 + $0x18c] sm:$0xff]
    %v110 = vld [vmem:[#allocation2 + $0x194] sm:$0xf]
    %v111 = vld [vmem:[#allocation2 + $0x198] sm:$0xff]
    %v112 = vld [vmem:[#allocation2 + $0x1a0] sm:$0xf]
    %v113 = vld [vmem:[#allocation2 + $0x1a4] sm:$0xff]
    %v114 = vld [vmem:[#allocation2 + $0x1ac] sm:$0xf]
    %v115 = vld [vmem:[#allocation2 + $0x1b0] sm:$0xff]
    %v116 = vld [vmem:[#allocation2 + $0x1b8] sm:$0xf]
    %v117 = vld [vmem:[#allocation2 + $0x1bc] sm:$0xff]
    %v118 = vld [vmem:[#allocation2 + $0x1c4] sm:$0xf]
    %v119 = vld [vmem:[#allocation2 + $0x1c8] sm:$0xff]
    %v120 = vld [vmem:[#allocation2 + $0x1d0] sm:$0xf]
    %v121 = vld [vmem:[#allocation2 + $0x1d4] sm:$0xff]
    %v122 = vld [vmem:[#allocation2 + $0x1dc] sm:$0xf]
    %v123 = vld [vmem:[#allocation2 + $0x1e0] sm:$0xff]
    %v124 = vld [vmem:[#allocation2 + $0x1e8] sm:$0xf]
    %v125 = vld [vmem:[#allocation2 + $0x1ec] sm:$0xff]
    %v126 = vld [vmem:[#allocation2 + $0x1f4] sm:$0xf]
    %v127 = vld [vmem:[#allocation2 + $0x1f8] sm:$0xff]
    %v128 = vld [vmem:[#allocation2 + $0x200] sm:$0xf]
    %v129 = vld [vmem:[#allocation2 + $0x204] sm:$0xff]
    %v130 = vld [vmem:[#allocation2 + $0x20c] sm:$0xf]
    %v131 = vld [vmem:[#allocation2 + $0x210] sm:$0xff]
    %v132 = vld [vmem:[#allocation2 + $0x218] sm:$0xf]
    %v133 = vld [vmem:[#allocation2 + $0x21c] sm:$0xff]
    %v134 = vld [vmem:[#allocation2 + $0x224] sm:$0xf]
    %v135 = vld [vmem:[#allocation2 + $0x228] sm:$0xff]
    %v136 = vld [vmem:[#allocation2 + $0x230] sm:$0xf]
    %v137 = vld [vmem:[#allocation2 + $0x234] sm:$0xff]
    %v138 = vld [vmem:[#allocation2 + $0x23c] sm:$0xf]
    %v139 = vld [vmem:[#allocation2 + $0x240] sm:$0xff]
    %v140 = vld [vmem:[#allocation2 + $0x248] sm:$0xf]
    %v141 = vld [vmem:[#allocation2 + $0x24c] sm:$0xff]
    %v142 = vld [vmem:[#allocation2 + $0x254] sm:$0xf]
    %v143 = vld [vmem:[#allocation2 + $0x258] sm:$0xff]
    %v144 = vld [vmem:[#allocation2 + $0x260] sm:$0xf]
    %v145 = vld [vmem:[#allocation2 + $0x264] sm:$0xff]
    %v146 = vld [vmem:[#allocation2 + $0x26c] sm:$0xf]
    %v147 = vld [vmem:[#allocation2 + $0x270] sm:$0xff]
    %v148 = vld [vmem:[#allocation2 + $0x278] sm:$0xf]
    %v149 = vld [vmem:[#allocation2 + $0x27c] sm:$0xff]
    %v150 = vld [vmem:[#allocation2 + $0x284] sm:$0xf]
    %v151 = vld [vmem:[#allocation2 + $0x288] sm:$0xff]
    %v152 = vld [vmem:[#allocation2 + $0x290] sm:$0xf]
    %v153 = vld [vmem:[#allocation2 + $0x294] sm:$0xff]
    %v154 = vld [vmem:[#allocation2 + $0x29c] sm:$0xf]
    %v155 = vld [vmem:[#allocation2 + $0x2a0] sm:$0xff]
    %v156 = vld [vmem:[#allocation2 + $0x2a8] sm:$0xf]
    %v157 = vld [vmem:[#allocation2 + $0x2ac] sm:$0xff]
    %v158 = vld [vmem:[#allocation2 + $0x2b4] sm:$0xf]
    %v159 = vld [vmem:[#allocation2 + $0x2b8] sm:$0xff]
    %v160 = vld [vmem:[#allocation2 + $0x2c0] sm:$0xf]
    %v161 = vld [vmem:[#allocation2 + $0x2c4] sm:$0xff]
    %v162 = vld [vmem:[#allocation2 + $0x2cc] sm:$0xf]
    %v163 = vld [vmem:[#allocation2 + $0x2d0] sm:$0xff]
    %v164 = vld [vmem:[#allocation2 + $0x2d8] sm:$0xf]
    %v165 = vld [vmem:[#allocation2 + $0x2dc] sm:$0xff]
    %v166 = vld [vmem:[#allocation2 + $0x2e4] sm:$0xf]
    %v167 = vld [vmem:[#allocation2 + $0x2e8] sm:$0xff]
    %v168 = vld [vmem:[#allocation2 + $0x2f0] sm:$0xf]
    %v169 = vld [vmem:[#allocation2 + $0x2f4] sm:$0xff]
    %v170 = vld [vmem:[#allocation2 + $0x2fc] sm:$0xf]
    %v171 = vld [vmem:[%s2] sm:$0x7]
    %v173 = vlaneseq
    %v174 = vshrl.u32 %v173, 7
    %v175 = vsub.s32 0, %v174
    %v176 = vrot.slane %v171, %v175
    %v177 = vlaneseq
    %v178 = vshrl.u32 %v177, 7
    %v179 = vsub.s32 1, %v178
    %v180 = vrot.slane %v171, %v179
    %v181 = vlaneseq
    %v182 = vshrl.u32 %v181, 7
    %v183 = vsub.s32 2, %v182
    %v184 = vrot.slane %v171, %v183
    %v316 = vunpack.c.l.b16 %v43
    %v317 = vunpack.c.h.b16 %v43
    %v318 = vunpack.c.l.b16 %v44
    %v319 = vunpack.c.l.b16 %v45
    %v320 = vunpack.c.h.b16 %v45
    %v321 = vunpack.c.l.b16 %v46
    %v322 = vunpack.c.l.b16 %v47
    %v323 = vunpack.c.h.b16 %v47
    %v324 = vunpack.c.l.b16 %v48
    %v325 = vunpack.c.l.b16 %v49
    %v326 = vunpack.c.h.b16 %v49
    %v327 = vunpack.c.l.b16 %v50
    %v328 = vunpack.c.l.b16 %v51
    %v329 = vunpack.c.h.b16 %v51
    %v330 = vunpack.c.l.b16 %v52
    %v331 = vunpack.c.l.b16 %v53
    %v332 = vunpack.c.h.b16 %v53
    %v333 = vunpack.c.l.b16 %v54
    %v334 = vunpack.c.l.b16 %v55
    %v335 = vunpack.c.h.b16 %v55
    %v336 = vunpack.c.l.b16 %v56
    %v337 = vunpack.c.l.b16 %v57
    %v338 = vunpack.c.h.b16 %v57
    %v339 = vunpack.c.l.b16 %v58
    %v340 = vunpack.c.l.b16 %v59
    %v341 = vunpack.c.h.b16 %v59
    %v342 = vunpack.c.l.b16 %v60
    %v343 = vunpack.c.l.b16 %v61
    %v344 = vunpack.c.h.b16 %v61
    %v345 = vunpack.c.l.b16 %v62
    %v346 = vunpack.c.l.b16 %v63
    %v347 = vunpack.c.h.b16 %v63
    %v348 = vunpack.c.l.b16 %v64
    %v349 = vunpack.c.l.b16 %v65
    %v350 = vunpack.c.h.b16 %v65
    %v351 = vunpack.c.l.b16 %v66
    %v352 = vunpack.c.l.b16 %v67
    %v353 = vunpack.c.h.b16 %v67
    %v354 = vunpack.c.l.b16 %v68
    %v355 = vunpack.c.l.b16 %v69
    %v356 = vunpack.c.h.b16 %v69
    %v357 = vunpack.c.l.b16 %v70
    %v358 = vunpack.c.l.b16 %v71
    %v359 = vunpack.c.h.b16 %v71
    %v360 = vunpack.c.l.b16 %v72
    %v361 = vunpack.c.l.b16 %v73
    %v362 = vunpack.c.h.b16 %v73
    %v363 = vunpack.c.l.b16 %v74
    %v364 = vunpack.c.l.b16 %v75
    %v365 = vunpack.c.h.b16 %v75
    %v366 = vunpack.c.l.b16 %v76
    %v367 = vunpack.c.l.b16 %v77
    %v368 = vunpack.c.h.b16 %v77
    %v369 = vunpack.c.l.b16 %v78
    %v370 = vunpack.c.l.b16 %v79
    %v371 = vunpack.c.h.b16 %v79
    %v372 = vunpack.c.l.b16 %v80
    %v373 = vunpack.c.l.b16 %v81
    %v374 = vunpack.c.h.b16 %v81
    %v375 = vunpack.c.l.b16 %v82
    %v376 = vunpack.c.l.b16 %v83
    %v377 = vunpack.c.h.b16 %v83
    %v378 = vunpack.c.l.b16 %v84
    %v379 = vunpack.c.l.b16 %v85
    %v380 = vunpack.c.h.b16 %v85
    %v381 = vunpack.c.l.b16 %v86
    %v382 = vunpack.c.l.b16 %v87
    %v383 = vunpack.c.h.b16 %v87
    %v384 = vunpack.c.l.b16 %v88
    %v385 = vunpack.c.l.b16 %v89
    %v386 = vunpack.c.h.b16 %v89
    %v387 = vunpack.c.l.b16 %v90
    %v388 = vunpack.c.l.b16 %v91
    %v389 = vunpack.c.h.b16 %v91
    %v390 = vunpack.c.l.b16 %v92
    %v391 = vunpack.c.l.b16 %v93
    %v392 = vunpack.c.h.b16 %v93
    %v393 = vunpack.c.l.b16 %v94
    %v394 = vunpack.c.l.b16 %v95
    %v395 = vunpack.c.h.b16 %v95
    %v396 = vunpack.c.l.b16 %v96
    %v397 = vunpack.c.l.b16 %v97
    %v398 = vunpack.c.h.b16 %v97
    %v399 = vunpack.c.l.b16 %v98
    %v400 = vunpack.c.l.b16 %v99
    %v401 = vunpack.c.h.b16 %v99
    %v402 = vunpack.c.l.b16 %v100
    %v403 = vunpack.c.l.b16 %v101
    %v404 = vunpack.c.h.b16 %v101
    %v405 = vunpack.c.l.b16 %v102
    %v406 = vunpack.c.l.b16 %v103
    %v407 = vunpack.c.h.b16 %v103
    %v408 = vunpack.c.l.b16 %v104
    %v409 = vunpack.c.l.b16 %v105
    %v410 = vunpack.c.h.b16 %v105
    %v411 = vunpack.c.l.b16 %v106
    %v412 = vunpack.c.l.b16 %v107
    %v413 = vunpack.c.h.b16 %v107
    %v414 = vunpack.c.l.b16 %v108
    %v415 = vunpack.c.l.b16 %v109
    %v416 = vunpack.c.h.b16 %v109
    %v417 = vunpack.c.l.b16 %v110
    %v418 = vunpack.c.l.b16 %v111
    %v419 = vunpack.c.h.b16 %v111
    %v420 = vunpack.c.l.b16 %v112
    %v421 = vunpack.c.l.b16 %v113
    %v422 = vunpack.c.h.b16 %v113
    %v423 = vunpack.c.l.b16 %v114
    %v424 = vunpack.c.l.b16 %v115
    %v425 = vunpack.c.h.b16 %v115
    %v426 = vunpack.c.l.b16 %v116
    %v427 = vunpack.c.l.b16 %v117
    %v428 = vunpack.c.h.b16 %v117
    %v429 = vunpack.c.l.b16 %v118
    %v430 = vunpack.c.l.b16 %v119
    %v431 = vunpack.c.h.b16 %v119
    %v432 = vunpack.c.l.b16 %v120
    %v433 = vunpack.c.l.b16 %v121
    %v434 = vunpack.c.h.b16 %v121
    %v435 = vunpack.c.l.b16 %v122
    %v436 = vunpack.c.l.b16 %v123
    %v437 = vunpack.c.h.b16 %v123
    %v438 = vunpack.c.l.b16 %v124
    %v439 = vunpack.c.l.b16 %v125
    %v440 = vunpack.c.h.b16 %v125
    %v441 = vunpack.c.l.b16 %v126
    %v442 = vunpack.c.l.b16 %v127
    %v443 = vunpack.c.h.b16 %v127
    %v444 = vunpack.c.l.b16 %v128
    %v445 = vunpack.c.l.b16 %v129
    %v446 = vunpack.c.h.b16 %v129
    %v447 = vunpack.c.l.b16 %v130
    %v448 = vunpack.c.l.b16 %v131
    %v449 = vunpack.c.h.b16 %v131
    %v450 = vunpack.c.l.b16 %v132
    %v451 = vunpack.c.l.b16 %v133
    %v452 = vunpack.c.h.b16 %v133
    %v453 = vunpack.c.l.b16 %v134
    %v454 = vunpack.c.l.b16 %v135
    %v455 = vunpack.c.h.b16 %v135
    %v456 = vunpack.c.l.b16 %v136
    %v457 = vunpack.c.l.b16 %v137
    %v458 = vunpack.c.h.b16 %v137
    %v459 = vunpack.c.l.b16 %v138
    %v460 = vunpack.c.l.b16 %v139
    %v461 = vunpack.c.h.b16 %v139
    %v462 = vunpack.c.l.b16 %v140
    %v463 = vunpack.c.l.b16 %v141
    %v464 = vunpack.c.h.b16 %v141
    %v465 = vunpack.c.l.b16 %v142
    %v466 = vunpack.c.l.b16 %v143
    %v467 = vunpack.c.h.b16 %v143
    %v468 = vunpack.c.l.b16 %v144
    %v469 = vunpack.c.l.b16 %v145
    %v470 = vunpack.c.h.b16 %v145
    %v471 = vunpack.c.l.b16 %v146
    %v472 = vunpack.c.l.b16 %v147
    %v473 = vunpack.c.h.b16 %v147
    %v474 = vunpack.c.l.b16 %v148
    %v475 = vunpack.c.l.b16 %v149
    %v476 = vunpack.c.h.b16 %v149
    %v477 = vunpack.c.l.b16 %v150
    %v478 = vunpack.c.l.b16 %v151
    %v479 = vunpack.c.h.b16 %v151
    %v480 = vunpack.c.l.b16 %v152
    %v481 = vunpack.c.l.b16 %v153
    %v482 = vunpack.c.h.b16 %v153
    %v483 = vunpack.c.l.b16 %v154
    %v484 = vunpack.c.l.b16 %v155
    %v485 = vunpack.c.h.b16 %v155
    %v486 = vunpack.c.l.b16 %v156
    %v487 = vunpack.c.l.b16 %v157
    %v488 = vunpack.c.h.b16 %v157
    %v489 = vunpack.c.l.b16 %v158
    %v490 = vunpack.c.l.b16 %v159
    %v491 = vunpack.c.h.b16 %v159
    %v492 = vunpack.c.l.b16 %v160
    %v493 = vunpack.c.l.b16 %v161
    %v494 = vunpack.c.h.b16 %v161
    %v495 = vunpack.c.l.b16 %v162
    %v496 = vunpack.c.l.b16 %v163
    %v497 = vunpack.c.h.b16 %v163
    %v498 = vunpack.c.l.b16 %v164
    %v499 = vunpack.c.l.b16 %v165
    %v500 = vunpack.c.h.b16 %v165
    %v501 = vunpack.c.l.b16 %v166
    %v502 = vunpack.c.l.b16 %v167
    %v503 = vunpack.c.h.b16 %v167
    %v504 = vunpack.c.l.b16 %v168
    %v505 = vunpack.c.l.b16 %v169
    %v506 = vunpack.c.h.b16 %v169
    %v507 = vunpack.c.l.b16 %v170
    %v508 = vpack.c.b16 %v319, %v316
    %v509 = vpack.c.b16 %v320, %v317
    %v510 = vpack.c.b16 %v321, %v318
    %v511 = vpack.c.b16 %v325, %v322
    %v512 = vpack.c.b16 %v326, %v323
    %v513 = vpack.c.b16 %v327, %v324
    %v514 = vpack.c.b16 %v331, %v328
    %v515 = vpack.c.b16 %v332, %v329
    %v516 = vpack.c.b16 %v333, %v330
    %v517 = vpack.c.b16 %v337, %v334
    %v518 = vpack.c.b16 %v338, %v335
    %v519 = vpack.c.b16 %v339, %v336
    %v520 = vpack.c.b16 %v343, %v340
    %v521 = vpack.c.b16 %v344, %v341
    %v522 = vpack.c.b16 %v345, %v342
    %v523 = vpack.c.b16 %v349, %v346
    %v524 = vpack.c.b16 %v350, %v347
    %v525 = vpack.c.b16 %v351, %v348
    %v526 = vpack.c.b16 %v355, %v352
    %v527 = vpack.c.b16 %v356, %v353
    %v528 = vpack.c.b16 %v357, %v354
    %v529 = vpack.c.b16 %v361, %v358
    %v530 = vpack.c.b16 %v362, %v359
    %v531 = vpack.c.b16 %v363, %v360
    %v532 = vpack.c.b16 %v367, %v364
    %v533 = vpack.c.b16 %v368, %v365
    %v534 = vpack.c.b16 %v369, %v366
    %v535 = vpack.c.b16 %v373, %v370
    %v536 = vpack.c.b16 %v374, %v371
    %v537 = vpack.c.b16 %v375, %v372
    %v538 = vpack.c.b16 %v379, %v376
    %v539 = vpack.c.b16 %v380, %v377
    %v540 = vpack.c.b16 %v381, %v378
    %v541 = vpack.c.b16 %v385, %v382
    %v542 = vpack.c.b16 %v386, %v383
    %v543 = vpack.c.b16 %v387, %v384
    %v544 = vpack.c.b16 %v391, %v388
    %v545 = vpack.c.b16 %v392, %v389
    %v546 = vpack.c.b16 %v393, %v390
    %v547 = vpack.c.b16 %v397, %v394
    %v548 = vpack.c.b16 %v398, %v395
    %v549 = vpack.c.b16 %v399, %v396
    %v550 = vpack.c.b16 %v403, %v400
    %v551 = vpack.c.b16 %v404, %v401
    %v552 = vpack.c.b16 %v405, %v402
    %v553 = vpack.c.b16 %v409, %v406
    %v554 = vpack.c.b16 %v410, %v407
    %v555 = vpack.c.b16 %v411, %v408
    %v556 = vpack.c.b16 %v415, %v412
    %v557 = vpack.c.b16 %v416, %v413
    %v558 = vpack.c.b16 %v417, %v414
    %v559 = vpack.c.b16 %v421, %v418
    %v560 = vpack.c.b16 %v422, %v419
    %v561 = vpack.c.b16 %v423, %v420
    %v562 = vpack.c.b16 %v427, %v424
    %v563 = vpack.c.b16 %v428, %v425
    %v564 = vpack.c.b16 %v429, %v426
    %v565 = vpack.c.b16 %v433, %v430
    %v566 = vpack.c.b16 %v434, %v431
    %v567 = vpack.c.b16 %v435, %v432
    %v568 = vpack.c.b16 %v439, %v436
    %v569 = vpack.c.b16 %v440, %v437
    %v570 = vpack.c.b16 %v441, %v438
    %v571 = vpack.c.b16 %v445, %v442
    %v572 = vpack.c.b16 %v446, %v443
    %v573 = vpack.c.b16 %v447, %v444
    %v574 = vpack.c.b16 %v451, %v448
    %v575 = vpack.c.b16 %v452, %v449
    %v576 = vpack.c.b16 %v453, %v450
    %v577 = vpack.c.b16 %v457, %v454
    %v578 = vpack.c.b16 %v458, %v455
    %v579 = vpack.c.b16 %v459, %v456
    %v580 = vpack.c.b16 %v463, %v460
    %v581 = vpack.c.b16 %v464, %v461
    %v582 = vpack.c.b16 %v465, %v462
    %v583 = vpack.c.b16 %v469, %v466
    %v584 = vpack.c.b16 %v470, %v467
    %v585 = vpack.c.b16 %v471, %v468
    %v586 = vpack.c.b16 %v475, %v472
    %v587 = vpack.c.b16 %v476, %v473
    %v588 = vpack.c.b16 %v477, %v474
    %v589 = vpack.c.b16 %v481, %v478
    %v590 = vpack.c.b16 %v482, %v479
    %v591 = vpack.c.b16 %v483, %v480
    %v592 = vpack.c.b16 %v487, %v484
    %v593 = vpack.c.b16 %v488, %v485
    %v594 = vpack.c.b16 %v489, %v486
    %v595 = vpack.c.b16 %v493, %v490
    %v596 = vpack.c.b16 %v494, %v491
    %v597 = vpack.c.b16 %v495, %v492
    %v598 = vpack.c.b16 %v499, %v496
    %v599 = vpack.c.b16 %v500, %v497
    %v600 = vpack.c.b16 %v501, %v498
    %v601 = vpack.c.b16 %v505, %v502
    %v602 = vpack.c.b16 %v506, %v503
    %v603 = vpack.c.b16 %v507, %v504
    %700 = vmatprep.subr.bf16.mxu0 %v530
    %701 = vmatpush1.bf16.msra.mxu0 %v529
    %702 = vmatprep.subr.bf16.mxu0 %v527
    %703 = vmatpush1.bf16.msra.mxu0 %v526
    %704 = vmatprep.subr.bf16.mxu0 %v524
    %705 = vmatpush1.bf16.msra.mxu0 %v523
    %706 = vmatprep.subr.bf16.mxu0 %v521
    %707 = vmatpush1.bf16.msra.mxu0 %v520
    %708 = vmatprep.subr.bf16.mxu0 %v518
    %709 = vmatpush1.bf16.msra.mxu0 %v517
    %710 = vmatprep.subr.bf16.mxu0 %v515
    %711 = vmatpush1.bf16.msra.mxu0 %v514
    %712 = vmatprep.subr.bf16.mxu0 %v512
    %713 = vmatpush1.bf16.msra.mxu0 %v511
    %714 = vmatprep.subr.bf16.mxu0 %v509
    %715 = vmatpush1.bf16.msra.mxu0 %v508
    %716 = vmatprep.subr.bf16.mxu0 %v554
    %717 = vmatpush2.bf16.msra.mxu0 %v553
    %718 = vmatprep.subr.bf16.mxu0 %v551
    %719 = vmatpush2.bf16.msra.mxu0 %v550
    %720 = vmatprep.subr.bf16.mxu0 %v548
    %721 = vmatpush2.bf16.msra.mxu0 %v547
    %722 = vmatprep.subr.bf16.mxu0 %v545
    %723 = vmatpush2.bf16.msra.mxu0 %v544
    %724 = vmatprep.subr.bf16.mxu0 %v542
    %725 = vmatpush2.bf16.msra.mxu0 %v541
    %726 = vmatprep.subr.bf16.mxu0 %v539
    %727 = vmatpush2.bf16.msra.mxu0 %v538
    %728 = vmatprep.subr.bf16.mxu0 %v536
    %729 = vmatpush2.bf16.msra.mxu0 %v535
    %730 = vmatprep.subr.bf16.mxu0 %v533
    %731 = vmatpush2.bf16.msra.mxu0 %v532
    %732 = vmatprep.mubr.bf16.mxu0 %v40
    %733 = vmatmul.mubr.bf16.gmra.mxu0 %v39
    %v734 = vpop.f32.mrf.mxu0
    %v735 = vadd.f32 %v176, %v734
    %v736 = vpop.f32.mrf.mxu0
    %v737 = vadd.f32 %v180, %v736
    %v738 = vpop.f32.mrf.mxu0
    %v739 = vpop.f32.mrf.mxu0
    %740 = vdwg.mxu0
    %741 = vmatprep.subr.bf16.mxu0 %v578
    %742 = vmatpush1.bf16.msra.mxu0 %v577
    %743 = vmatprep.subr.bf16.mxu0 %v575
    %744 = vmatpush1.bf16.msra.mxu0 %v574
    %745 = vmatprep.subr.bf16.mxu0 %v572
    %746 = vmatpush1.bf16.msra.mxu0 %v571
    %747 = vmatprep.subr.bf16.mxu0 %v569
    %748 = vmatpush1.bf16.msra.mxu0 %v568
    %749 = vmatprep.subr.bf16.mxu0 %v566
    %750 = vmatpush1.bf16.msra.mxu0 %v565
    %751 = vmatprep.subr.bf16.mxu0 %v563
    %752 = vmatpush1.bf16.msra.mxu0 %v562
    %753 = vmatprep.subr.bf16.mxu0 %v560
    %754 = vmatpush1.bf16.msra.mxu0 %v559
    %755 = vmatprep.subr.bf16.mxu0 %v557
    %756 = vmatpush1.bf16.msra.mxu0 %v556
    %757 = vmatprep.subr.bf16.mxu0 %v602
    %758 = vmatpush2.bf16.msra.mxu0 %v601
    %759 = vmatprep.subr.bf16.mxu0 %v599
    %760 = vmatpush2.bf16.msra.mxu0 %v598
    %761 = vmatprep.subr.bf16.mxu0 %v596
    %762 = vmatpush2.bf16.msra.mxu0 %v595
    %763 = vmatprep.subr.bf16.mxu0 %v593
    %764 = vmatpush2.bf16.msra.mxu0 %v592
    %765 = vmatprep.subr.bf16.mxu0 %v590
    %766 = vmatpush2.bf16.msra.mxu0 %v589
    %767 = vmatprep.subr.bf16.mxu0 %v587
    %768 = vmatpush2.bf16.msra.mxu0 %v586
    %769 = vmatprep.subr.bf16.mxu0 %v584
    %770 = vmatpush2.bf16.msra.mxu0 %v583
    %771 = vmatprep.subr.bf16.mxu0 %v581
    %772 = vmatpush2.bf16.msra.mxu0 %v580
    %773 = vmatprep.mubr.bf16.mxu0 %v42
    %774 = vmatmul.mubr.bf16.gmra.mxu0 %v41
    %v775 = vpop.f32.mrf.mxu0
    %v776 = vadd.f32 %v735, %v775
    %v777 = vpop.f32.mrf.mxu0
    %v778 = vadd.f32 %v737, %v777
    %v779 = vpop.f32.mrf.mxu0
    %v780 = vpop.f32.mrf.mxu0
    %781 = vdwg.mxu0
    %782 = vmatprep.subr.bf16.mxu0 0
    %783 = vmatpush1.bf16.msra.mxu0 %v531
    %784 = vmatprep.subr.bf16.mxu0 0
    %785 = vmatpush1.bf16.msra.mxu0 %v528
    %786 = vmatprep.subr.bf16.mxu0 0
    %787 = vmatpush1.bf16.msra.mxu0 %v525
    %788 = vmatprep.subr.bf16.mxu0 0
    %789 = vmatpush1.bf16.msra.mxu0 %v522
    %790 = vmatprep.subr.bf16.mxu0 0
    %791 = vmatpush1.bf16.msra.mxu0 %v519
    %792 = vmatprep.subr.bf16.mxu0 0
    %793 = vmatpush1.bf16.msra.mxu0 %v516
    %794 = vmatprep.subr.bf16.mxu0 0
    %795 = vmatpush1.bf16.msra.mxu0 %v513
    %796 = vmatprep.subr.bf16.mxu0 0
    %797 = vmatpush1.bf16.msra.mxu0 %v510
    %798 = vmatprep.subr.bf16.mxu0 0
    %799 = vmatpush2.bf16.msra.mxu0 %v555
    %800 = vmatprep.subr.bf16.mxu0 0
    %801 = vmatpush2.bf16.msra.mxu0 %v552
    %802 = vmatprep.subr.bf16.mxu0 0
    %803 = vmatpush2.bf16.msra.mxu0 %v549
    %804 = vmatprep.subr.bf16.mxu0 0
    %805 = vmatpush2.bf16.msra.mxu0 %v546
    %806 = vmatprep.subr.bf16.mxu0 0
    %807 = vmatpush2.bf16.msra.mxu0 %v543
    %808 = vmatprep.subr.bf16.mxu0 0
    %809 = vmatpush2.bf16.msra.mxu0 %v540
    %810 = vmatprep.subr.bf16.mxu0 0
    %811 = vmatpush2.bf16.msra.mxu0 %v537
    %812 = vmatprep.subr.bf16.mxu0 0
    %813 = vmatpush2.bf16.msra.mxu0 %v534
    %814 = vmatprep.mubr.bf16.mxu0 %v40
    %815 = vmatmul.mubr.bf16.gmra.mxu0 %v39
    %v816 = vpop.f32.mrf.mxu0
    %v817 = vadd.f32 %v184, %v816
    %v818 = vpop.f32.mrf.mxu0
    %v819 = vpop.f32.mrf.mxu0
    %v820 = vpop.f32.mrf.mxu0
    %821 = vdwg.mxu0
    %822 = vmatprep.subr.bf16.mxu0 0
    %823 = vmatpush1.bf16.msra.mxu0 %v579
    %824 = vmatprep.subr.bf16.mxu0 0
    %825 = vmatpush1.bf16.msra.mxu0 %v576
    %826 = vmatprep.subr.bf16.mxu0 0
    %827 = vmatpush1.bf16.msra.mxu0 %v573
    %828 = vmatprep.subr.bf16.mxu0 0
    %829 = vmatpush1.bf16.msra.mxu0 %v570
    %830 = vmatprep.subr.bf16.mxu0 0
    %831 = vmatpush1.bf16.msra.mxu0 %v567
    %832 = vmatprep.subr.bf16.mxu0 0
    %833 = vmatpush1.bf16.msra.mxu0 %v564
    %834 = vmatprep.subr.bf16.mxu0 0
    %835 = vmatpush1.bf16.msra.mxu0 %v561
    %836 = vmatprep.subr.bf16.mxu0 0
    %837 = vmatpush1.bf16.msra.mxu0 %v558
    %838 = vmatprep.subr.bf16.mxu0 0
    %839 = vmatpush2.bf16.msra.mxu0 %v603
    %840 = vmatprep.subr.bf16.mxu0 0
    %841 = vmatpush2.bf16.msra.mxu0 %v600
    %842 = vmatprep.subr.bf16.mxu0 0
    %843 = vmatpush2.bf16.msra.mxu0 %v597
    %844 = vmatprep.subr.bf16.mxu0 0
    %845 = vmatpush2.bf16.msra.mxu0 %v594
    %846 = vmatprep.subr.bf16.mxu0 0
    %847 = vmatpush2.bf16.msra.mxu0 %v591
    %848 = vmatprep.subr.bf16.mxu0 0
    %849 = vmatpush2.bf16.msra.mxu0 %v588
    %850 = vmatprep.subr.bf16.mxu0 0
    %851 = vmatpush2.bf16.msra.mxu0 %v585
    %852 = vmatprep.subr.bf16.mxu0 0
    %853 = vmatpush2.bf16.msra.mxu0 %v582
    %854 = vmatprep.mubr.bf16.mxu0 %v42
    %855 = vmatmul.mubr.bf16.gmra.mxu0 %v41
    %v856 = vpop.f32.mrf.mxu0
    %v857 = vadd.f32 %v817, %v856
    %v858 = vpop.f32.mrf.mxu0
    %v859 = vpop.f32.mrf.mxu0
    %v860 = vpop.f32.mrf.mxu0
    %861 = vdwg.mxu0
    %v862 = vmax.f32 %v776, 0.0
    %v863 = vmax.f32 %v778, 0.0
    %v864 = vmax.f32 %v857, 0.0
    %v865 = vpack.c.bf16 %v862, %v862
    %v866 = vpack.c.bf16 %v863, %v863
    %v867 = vpack.c.bf16 %v864, %v864
    %v868 = vld [vmem:[%s3] sm:$0xf]
    %v869 = vld [vmem:[%s3 + $0x4] sm:$0xf]
    %v870 = vld [vmem:[%s3 + $0x8] sm:$0xf]
    %v871 = vld [vmem:[%s3 + $0xc] sm:$0xf]
    %v872 = vld [vmem:[%s3 + $0x10] sm:$0xf]
    %v873 = vld [vmem:[%s3 + $0x14] sm:$0xf]
    %v874 = vld [vmem:[%s3 + $0x18] sm:$0xf]
    %v875 = vld [vmem:[%s3 + $0x1c] sm:$0xf]
    %v876 = vld [vmem:[%s3 + $0x20] sm:$0xf]
    %v877 = vld [vmem:[%s3 + $0x24] sm:$0xf]
    %v878 = vld [vmem:[%s3 + $0x28] sm:$0xf]
    %v879 = vld [vmem:[%s3 + $0x2c] sm:$0xf]
    %v880 = vld [vmem:[%s3 + $0x30] sm:$0xf]
    %v881 = vld [vmem:[%s3 + $0x34] sm:$0xf]
    %v882 = vld [vmem:[%s3 + $0x38] sm:$0xf]
    %v883 = vld [vmem:[%s3 + $0x3c] sm:$0xf]
    %v884 = vld [vmem:[%s3 + $0x40] sm:$0xf]
    %v885 = vld [vmem:[%s3 + $0x44] sm:$0xf]
    %v886 = vld [vmem:[%s3 + $0x48] sm:$0xf]
    %v887 = vld [vmem:[%s3 + $0x4c] sm:$0xf]
    %v888 = vld [vmem:[%s3 + $0x50] sm:$0xf]
    %v889 = vld [vmem:[%s3 + $0x54] sm:$0xf]
    %v890 = vld [vmem:[%s3 + $0x58] sm:$0xf]
    %v891 = vld [vmem:[%s3 + $0x5c] sm:$0xf]
    %v892 = vld [vmem:[%s3 + $0x60] sm:$0xf]
    %v893 = vld [vmem:[%s3 + $0x64] sm:$0xf]
    %v894 = vld [vmem:[%s3 + $0x68] sm:$0xf]
    %v895 = vld [vmem:[%s3 + $0x6c] sm:$0xf]
    %v896 = vld [vmem:[%s3 + $0x70] sm:$0xf]
    %v897 = vld [vmem:[%s3 + $0x74] sm:$0xf]
    %v898 = vld [vmem:[%s3 + $0x78] sm:$0xf]
    %v899 = vld [vmem:[%s3 + $0x7c] sm:$0xf]
    %v900 = vld [vmem:[%s3 + $0x80] sm:$0xf]
    %v901 = vld [vmem:[%s3 + $0x84] sm:$0xf]
    %v902 = vld [vmem:[%s3 + $0x88] sm:$0xf]
    %v903 = vld [vmem:[%s3 + $0x8c] sm:$0xf]
    %v904 = vld [vmem:[%s3 + $0x90] sm:$0xf]
    %v905 = vld [vmem:[%s3 + $0x94] sm:$0xf]
    %v906 = vld [vmem:[%s3 + $0x98] sm:$0xf]
    %v907 = vld [vmem:[%s3 + $0x9c] sm:$0xf]
    %v908 = vld [vmem:[%s3 + $0xa0] sm:$0xf]
    %v909 = vld [vmem:[%s3 + $0xa4] sm:$0xf]
    %v910 = vld [vmem:[%s3 + $0xa8] sm:$0xf]
    %v911 = vld [vmem:[%s3 + $0xac] sm:$0xf]
    %v912 = vld [vmem:[%s3 + $0xb0] sm:$0xf]
    %v913 = vld [vmem:[%s3 + $0xb4] sm:$0xf]
    %v914 = vld [vmem:[%s3 + $0xb8] sm:$0xf]
    %v915 = vld [vmem:[%s3 + $0xbc] sm:$0xf]
    %v916 = vld [vmem:[%s4] sm:$0x1]
    %v918 = vlaneseq
    %v919 = vshrl.u32 %v918, 7
    %v920 = vsub.s32 0, %v919
    %v921 = vrot.slane %v916, %v920
    %v971 = vunpack.c.l.b16 %v868
    %v972 = vunpack.c.l.b16 %v869
    %v973 = vunpack.c.l.b16 %v870
    %v974 = vunpack.c.l.b16 %v871
    %v975 = vunpack.c.l.b16 %v872
    %v976 = vunpack.c.l.b16 %v873
    %v977 = vunpack.c.l.b16 %v874
    %v978 = vunpack.c.l.b16 %v875
    %v979 = vunpack.c.l.b16 %v876
    %v980 = vunpack.c.l.b16 %v877
    %v981 = vunpack.c.l.b16 %v878
    %v982 = vunpack.c.l.b16 %v879
    %v983 = vunpack.c.l.b16 %v880
    %v984 = vunpack.c.l.b16 %v881
    %v985 = vunpack.c.l.b16 %v882
    %v986 = vunpack.c.l.b16 %v883
    %v987 = vunpack.c.l.b16 %v884
    %v988 = vunpack.c.l.b16 %v885
    %v989 = vunpack.c.l.b16 %v886
    %v990 = vunpack.c.l.b16 %v887
    %v991 = vunpack.c.l.b16 %v888
    %v992 = vunpack.c.l.b16 %v889
    %v993 = vunpack.c.l.b16 %v890
    %v994 = vunpack.c.l.b16 %v891
    %v995 = vunpack.c.l.b16 %v892
    %v996 = vunpack.c.l.b16 %v893
    %v997 = vunpack.c.l.b16 %v894
    %v998 = vunpack.c.l.b16 %v895
    %v999 = vunpack.c.l.b16 %v896
    %v1000 = vunpack.c.l.b16 %v897
    %v1001 = vunpack.c.l.b16 %v898
    %v1002 = vunpack.c.l.b16 %v899
    %v1003 = vunpack.c.l.b16 %v900
    %v1004 = vunpack.c.l.b16 %v901
    %v1005 = vunpack.c.l.b16 %v902
    %v1006 = vunpack.c.l.b16 %v903
    %v1007 = vunpack.c.l.b16 %v904
    %v1008 = vunpack.c.l.b16 %v905
    %v1009 = vunpack.c.l.b16 %v906
    %v1010 = vunpack.c.l.b16 %v907
    %v1011 = vunpack.c.l.b16 %v908
    %v1012 = vunpack.c.l.b16 %v909
    %v1013 = vunpack.c.l.b16 %v910
    %v1014 = vunpack.c.l.b16 %v911
    %v1015 = vunpack.c.l.b16 %v912
    %v1016 = vunpack.c.l.b16 %v913
    %v1017 = vunpack.c.l.b16 %v914
    %v1018 = vunpack.c.l.b16 %v915
    %v1019 = vpack.c.b16 %v972, %v971
    %v1020 = vpack.c.b16 %v974, %v973
    %v1021 = vpack.c.b16 %v976, %v975
    %v1022 = vpack.c.b16 %v978, %v977
    %v1023 = vpack.c.b16 %v980, %v979
    %v1024 = vpack.c.b16 %v982, %v981
    %v1025 = vpack.c.b16 %v984, %v983
    %v1026 = vpack.c.b16 %v986, %v985
    %v1027 = vpack.c.b16 %v988, %v987
    %v1028 = vpack.c.b16 %v990, %v989
    %v1029 = vpack.c.b16 %v992, %v991
    %v1030 = vpack.c.b16 %v994, %v993
    %v1031 = vpack.c.b16 %v996, %v995
    %v1032 = vpack.c.b16 %v998, %v997
    %v1033 = vpack.c.b16 %v1000, %v999
    %v1034 = vpack.c.b16 %v1002, %v1001
    %v1035 = vpack.c.b16 %v1004, %v1003
    %v1036 = vpack.c.b16 %v1006, %v1005
    %v1037 = vpack.c.b16 %v1008, %v1007
    %v1038 = vpack.c.b16 %v1010, %v1009
    %v1039 = vpack.c.b16 %v1012, %v1011
    %v1040 = vpack.c.b16 %v1014, %v1013
    %v1041 = vpack.c.b16 %v1016, %v1015
    %v1042 = vpack.c.b16 %v1018, %v1017
    %1067 = vmatprep.subr.bf16.mxu0 0
    %1068 = vmatpush1.bf16.msra.mxu0 %v1026
    %1069 = vmatprep.subr.bf16.mxu0 0
    %1070 = vmatpush1.bf16.msra.mxu0 %v1025
    %1071 = vmatprep.subr.bf16.mxu0 0
    %1072 = vmatpush1.bf16.msra.mxu0 %v1024
    %1073 = vmatprep.subr.bf16.mxu0 0
    %1074 = vmatpush1.bf16.msra.mxu0 %v1023
    %1075 = vmatprep.subr.bf16.mxu0 0
    %1076 = vmatpush1.bf16.msra.mxu0 %v1022
    %1077 = vmatprep.subr.bf16.mxu0 0
    %1078 = vmatpush1.bf16.msra.mxu0 %v1021
    %1079 = vmatprep.subr.bf16.mxu0 0
    %1080 = vmatpush1.bf16.msra.mxu0 %v1020
    %1081 = vmatprep.subr.bf16.mxu0 0
    %1082 = vmatpush1.bf16.msra.mxu0 %v1019
    %1083 = vmatprep.subr.bf16.mxu0 0
    %1084 = vmatpush2.bf16.msra.mxu0 %v1034
    %1085 = vmatprep.subr.bf16.mxu0 0
    %1086 = vmatpush2.bf16.msra.mxu0 %v1033
    %1087 = vmatprep.subr.bf16.mxu0 0
    %1088 = vmatpush2.bf16.msra.mxu0 %v1032
    %1089 = vmatprep.subr.bf16.mxu0 0
    %1090 = vmatpush2.bf16.msra.mxu0 %v1031
    %1091 = vmatprep.subr.bf16.mxu0 0
    %1092 = vmatpush2.bf16.msra.mxu0 %v1030
    %1093 = vmatprep.subr.bf16.mxu0 0
    %1094 = vmatpush2.bf16.msra.mxu0 %v1029
    %1095 = vmatprep.subr.bf16.mxu0 0
    %1096 = vmatpush2.bf16.msra.mxu0 %v1028
    %1097 = vmatprep.subr.bf16.mxu0 0
    %1098 = vmatpush2.bf16.msra.mxu0 %v1027
    %1099 = vmatprep.mubr.bf16.mxu0 %v866
    %1100 = vmatmul.mubr.bf16.gmra.mxu0 %v865
    %v1101 = vpop.f32.mrf.mxu0
    %v1102 = vadd.f32 %v921, %v1101
    %v1103 = vpop.f32.mrf.mxu0
    %v1104 = vpop.f32.mrf.mxu0
    %v1105 = vpop.f32.mrf.mxu0
    %1106 = vdwg.mxu0
    %1107 = vmatprep.subr.bf16.mxu0 0
    %1108 = vmatpush1.bf16.msra.mxu0 %v1042
    %1109 = vmatprep.subr.bf16.mxu0 0
    %1110 = vmatpush1.bf16.msra.mxu0 %v1041
    %1111 = vmatprep.subr.bf16.mxu0 0
    %1112 = vmatpush1.bf16.msra.mxu0 %v1040
    %1113 = vmatprep.subr.bf16.mxu0 0
    %1114 = vmatpush1.bf16.msra.mxu0 %v1039
    %1115 = vmatprep.subr.bf16.mxu0 0
    %1116 = vmatpush1.bf16.msra.mxu0 %v1038
    %1117 = vmatprep.subr.bf16.mxu0 0
    %1118 = vmatpush1.bf16.msra.mxu0 %v1037
    %1119 = vmatprep.subr.bf16.mxu0 0
    %1120 = vmatpush1.bf16.msra.mxu0 %v1036
    %1121 = vmatprep.subr.bf16.mxu0 0
    %1122 = vmatpush1.bf16.msra.mxu0 %v1035
    %1123 = vmatprep.subr.bf16.mxu0 0
    %1124 = vmatpush2.bf16.msra.mxu0 0
    %1125 = vmatprep.subr.bf16.mxu0 0
    %1126 = vmatpush2.bf16.msra.mxu0 0
    %1127 = vmatprep.subr.bf16.mxu0 0
    %1128 = vmatpush2.bf16.msra.mxu0 0
    %1129 = vmatprep.subr.bf16.mxu0 0
    %1130 = vmatpush2.bf16.msra.mxu0 0
    %1131 = vmatprep.subr.bf16.mxu0 0
    %1132 = vmatpush2.bf16.msra.mxu0 0
    %1133 = vmatprep.subr.bf16.mxu0 0
    %1134 = vmatpush2.bf16.msra.mxu0 0
    %1135 = vmatprep.subr.bf16.mxu0 0
    %1136 = vmatpush2.bf16.msra.mxu0 0
    %1137 = vmatprep.subr.bf16.mxu0 0
    %1138 = vmatpush2.bf16.msra.mxu0 0
    %1139 = vmatprep.mubr.bf16.mxu0 0
    %1140 = vmatmul.mubr.bf16.gmra.mxu0 %v867
    %v1141 = vpop.f32.mrf.mxu0
    %v1142 = vadd.f32 %v1102, %v1141
    %v1143 = vpop.f32.mrf.mxu0
    %v1144 = vpop.f32.mrf.mxu0
    %v1145 = vpop.f32.mrf.mxu0
    %1146 = vdwg.mxu0
    %v1147 = vmax.f32 %v1142, 0.0
    %vm1148 = vcmask 31744
    %1149 = vst.msk [vmem:[%s5] sm:$0xff] %vm1148, %v1147
    // Predicated region
    $region26: #{tpu_custom_call.1} parent=1 // pred_check
      _
    $region27: #{tpu_custom_call.1} parent=1 // pred_check_branch
      %1151 = sbr.rel (0) target = $region29
    $region28: #{tpu_custom_call.1} parent=1 // pred_region
      _
    $region29: #{tpu_custom_call.1} parent=1 // pred_fallthru
      _
    // Predicated region
    $region30: #{tpu_custom_call.1} parent=1 // pred_check
      _
    $region31: #{tpu_custom_call.1} parent=1 // pred_check_branch
      %1153 = sbr.rel (0) target = $region33
    $region32: #{tpu_custom_call.1} parent=1 // pred_region
      _
    $region33: #{tpu_custom_call.1} parent=1 // pred_fallthru
      _
    %1154 = vsyncpa [#allocation3], 1

</llo_original>
